<compile_context>
chip_gen: v7x
topology: tpu7x:2x2x1
jax: 0.10.0
libtpu: 0.0.40
codegen_flags: <defaults>
</compile_context>

<pallas_src>
import functools

import numpy as np

import jax
import jax.numpy as jnp
from jax.experimental import pallas as pl
from jax.experimental.pallas import tpu as pltpu


ROWS_PER_STEP = 8                      # sublane-aligned output block height
# Conservative so table + double-buffered output fits v7x's 32 MiB scoped VMEM
# default (v5e/v6e have 128 MiB physical, so this is safe everywhere).
VMEM_TABLE_BUDGET_BYTES = 20 * 1024 * 1024


def _resident_gather_kernel(idx_ref, table_ref, out_ref):
    # idx_ref   : SMEM scalar-prefetch ref, (B_padded,) int32
    # table_ref : VMEM ref, (num_genres, emb) -- full table, resident across grid
    # out_ref   : VMEM ref, (ROWS_PER_STEP, emb)
    base = pl.program_id(0) * ROWS_PER_STEP
    # ROWS_PER_STEP is tiny and static -> plain unrolled copies (static sublane
    # stores, dynamic sublane loads from the resident table).
    for r in range(ROWS_PER_STEP):
        row = idx_ref[base + r]
        out_ref[pl.ds(r, 1), :] = table_ref[pl.ds(row, 1), :]


def _row_dma_kernel(idx_ref, row_ref, out_ref):
    # idx_ref : SMEM scalar-prefetch ref (only drives the data-dependent
    #           index_map; unused in the body).
    # row_ref : VMEM ref, (1, emb) -- the already-gathered table row.
    # out_ref : VMEM ref, (1, emb)
    del idx_ref
    out_ref[...] = row_ref[...]


def genre_embed_lookup(genre_emb: jax.Array, genre_idx: jax.Array,
                       *, force_row_dma: bool = False) -> jax.Array:
    """Pallas equivalent of torch.index_select(genre_emb, 0, genre_idx).

    genre_emb: (num_genres, emb) float32, emb % 128 == 0
    genre_idx: (B,) integer indices
    returns:   (B, emb) float32
    """
    num_genres, emb = genre_emb.shape
    assert emb % 128 == 0, "pad the lane dim to a multiple of 128 before calling"
    b = genre_idx.shape[0]
    b_pad = ((b + ROWS_PER_STEP - 1) // ROWS_PER_STEP) * ROWS_PER_STEP

    # Clamp: data-dependent DMA / dynamic in-kernel slicing have no bounds check.
    idx = jnp.clip(genre_idx.astype(jnp.int32), 0, num_genres - 1)
    if b_pad != b:
        idx = jnp.pad(idx, (0, b_pad - b))          # pad rows gather index 0

    itemsize = jnp.dtype(genre_emb.dtype).itemsize
    table_bytes = num_genres * emb * itemsize
    out_block_bytes = ROWS_PER_STEP * emb * itemsize

    if (not force_row_dma) and table_bytes <= VMEM_TABLE_BUDGET_BYTES:
        # --- Table-resident path: one table DMA amortized over all lookups. ---
        vmem_limit = max(int(table_bytes + 4 * out_block_bytes) + (4 << 20),
                         8 << 20)
        out = pl.pallas_call(
            _resident_gather_kernel,
            out_shape=jax.ShapeDtypeStruct((b_pad, emb), genre_emb.dtype),
            grid_spec=pltpu.PrefetchScalarGridSpec(
                num_scalar_prefetch=1,              # idx -> SMEM
                grid=(b_pad // ROWS_PER_STEP,),
                in_specs=[
                    # Whole table, constant block index -> DMA'd once, stays
                    # resident in VMEM across the grid.
                    pl.BlockSpec((num_genres, emb), lambda t, idx_ref: (0, 0)),
                ],
                out_specs=pl.BlockSpec((ROWS_PER_STEP, emb),
                                       lambda t, idx_ref: (t, 0)),
            ),
            compiler_params=pltpu.CompilerParams(
                # Latency-bound few-KiB gather: no cross-TC split; "arbitrary"
                # keeps sequential order (residency / duplicate-block reuse).
                dimension_semantics=("arbitrary",),
                vmem_limit_bytes=vmem_limit,
            ),
        )(idx, genre_emb)
    else:
        # --- Fallback for tables too large for VMEM: per-row data-dependent
        #     HBM DMA, with deeper buffering to hide the tiny-transfer latency.
        try:
            row_spec = pl.BlockSpec((1, emb),
                                    lambda i, idx_ref: (idx_ref[i], 0),
                                    pipeline_mode=pl.Buffered(4))
        except (TypeError, AttributeError):
            row_spec = pl.BlockSpec((1, emb),
                                    lambda i, idx_ref: (idx_ref[i], 0))
        out = pl.pallas_call(
            _row_dma_kernel,
            out_shape=jax.ShapeDtypeStruct((b_pad, emb), genre_emb.dtype),
            grid_spec=pltpu.PrefetchScalarGridSpec(
                num_scalar_prefetch=1,
                grid=(b_pad,),
                in_specs=[row_spec],
                out_specs=pl.BlockSpec((1, emb), lambda i, idx_ref: (i, 0)),
            ),
            compiler_params=pltpu.CompilerParams(
                # Sequential order lets Pallas skip re-DMA for consecutive
                # duplicate indices (e.g. unknown genres all mapping to 0).
                dimension_semantics=("arbitrary",),
            ),
        )(idx, genre_emb)

    return out[:b]


_lookup_jit = jax.jit(genre_embed_lookup, static_argnames=("force_row_dma",))


def _bucket_size(n: int) -> int:
    """Next power of two >= ROWS_PER_STEP (fixed buckets -> no retrace per B)."""
    n = max(int(n), 1)
    return max(ROWS_PER_STEP, 1 << (n - 1).bit_length())


class GenreEmbedder:
    """JAX/Pallas port of the PyTorch GenreEmbedder module."""

    def __init__(self, config, key):
        num_genres = len(config["genres"])
        emb_size = config["genre"]["genre_emb_size"]
        self.emb_size = emb_size
        # Deterministic synthetic parameter init (stands in for load_from(...)).
        # TODO(synk): real checkpoint loading (load_from) is host I/O, out of scope.
        self.genre_emb = jax.random.normal(
            key, (num_genres, emb_size), dtype=jnp.float32
        )
        # Pad the lane dim to a multiple of 128 once so stores are never masked
        # partial vst (padding stripped after the kernel).
        padded = ((emb_size + 127) // 128) * 128
        if padded != emb_size:
            self._table = jnp.pad(self.genre_emb, ((0, 0), (0, padded - emb_size)))
        else:
            self._table = self.genre_emb
        self.genres = {g: i for i, g in enumerate(config["genres"])}
        # Cache padded device index vectors per genre -> single-string forward is
        # one cached transfer-free lookup, one grid step, one trace.
        def _padded_idx(i):
            v = np.zeros((ROWS_PER_STEP,), dtype=np.int32)
            v[0] = i
            return jnp.asarray(v)
        self._idx_cache = {g: _padded_idx(i) for g, i in self.genres.items()}
        self._default_idx = _padded_idx(0)

    def __call__(self, genre_string: str) -> jax.Array:
        # Matches torch forward: one string -> (1, emb_size).  Routed through the
        # same bucketed Pallas path (B padded to 8 -> a single grid step).
        idx = self._idx_cache.get(genre_string, self._default_idx)
        out = _lookup_jit(self._table, idx)
        return out[:1, : self.emb_size]

    def embed_batch(self, genre_strings) -> jax.Array:
        # Batched variant: (B, emb_size).  B is bucketed to a fixed size so a new
        # batch length does not trigger a retrace / Mosaic recompile.
        n = len(genre_strings)
        bucket = _bucket_size(n)
        idx_np = np.zeros((bucket,), dtype=np.int32)
        idx_np[:n] = [self.genres.get(g, 0) for g in genre_strings]
        out = _lookup_jit(self._table, jnp.asarray(idx_np))
        return out[:n, : self.emb_size]


if __name__ == "__main__":
    config = {
        "genres": ["rock", "pop", "jazz", "classical",
                   "hiphop", "metal", "folk", "electronic"],
        "genre": {"genre_emb_size": 128},
        "device": None,  # unused in JAX port
    }
    key = jax.random.PRNGKey(0)
    embedder = GenreEmbedder(config, key)

    # Single-string forward (matches torch.index_select semantics).
    out_jazz = jax.block_until_ready(embedder("jazz"))        # known genre -> index 2
    out_unknown = jax.block_until_ready(embedder("polka"))    # unknown    -> index 0

    # Batched lookup amortizing dispatch overhead (bucketed to 8 internally).
    batch = ["rock", "metal", "polka", "electronic"]           # -> [0, 5, 0, 7]
    out_batch = jax.block_until_ready(embedder.embed_batch(batch))

    # Sanity checks against pure-JAX references (index_select semantics).
    emb = embedder.genre_emb
    assert out_jazz.shape == (1, config["genre"]["genre_emb_size"])
    assert jnp.allclose(out_jazz, emb[2:3, :])
    assert jnp.allclose(out_unknown, emb[0:1, :])
    ref_batch = emb[jnp.array([0, 5, 0, 7]), :]
    assert out_batch.shape == (4, config["genre"]["genre_emb_size"])
    assert jnp.allclose(out_batch, ref_batch)

    # Also exercise the large-table fallback path (per-row data-dependent DMA).
    fb_idx = jnp.array([3, 0, 7, 7, 1], dtype=jnp.int32)
    out_fb = jax.block_until_ready(
        genre_embed_lookup(embedder._table, fb_idx, force_row_dma=True))
    assert out_fb.shape == (5, 128)
    assert jnp.allclose(out_fb[:, : embedder.emb_size], emb[fb_idx, :])

    print("KERNEL_OK")
</pallas_src>

<mosaic_0001>
module attributes {stable_mosaic.version = 11 : i64} {
  func.func @_resident_gather_kernel(%arg0: i32, %arg1: memref<8xi32, #tpu.memory_space<smem>>, %arg2: memref<8x128xf32, #tpu.memory_space<vmem>>, %arg3: memref<8x128xf32, #tpu.memory_space<vmem>>) attributes {dimension_semantics = [#tpu.dimension_semantics<arbitrary>], iteration_bounds = array<i64: 1>, scalar_prefetch = 1 : i64, scratch_operands = 0 : i64, tpu.core_type = #tpu.core_type<tc>, window_params = [{pipeline_mode = #tpu.pipeline_mode<synchronous>, transform_indices = @transform_0, window_bounds = array<i64: 8, 128>}, {transform_indices = @transform_1, window_bounds = array<i64: 8, 128>}]} {
    %c8_i32 = arith.constant 8 : i32
    %0 = arith.muli %arg0, %c8_i32 : i32
    %c0_i32 = arith.constant 0 : i32
    %1 = arith.addi %0, %c0_i32 : i32
    %2 = arith.index_cast %1 : i32 to index
    %3 = memref.load %arg1[%2] : memref<8xi32, #tpu.memory_space<smem>>
    %4 = arith.index_cast %3 : i32 to index
    %c0 = arith.constant 0 : index
    %5 = vector.load %arg2[%4, %c0] : memref<8x128xf32, #tpu.memory_space<vmem>>, vector<1x128xf32>
    %c0_0 = arith.constant 0 : index
    %c0_1 = arith.constant 0 : index
    %6 = vector.load %arg3[%c0_0, %c0_1] : memref<8x128xf32, #tpu.memory_space<vmem>>, vector<1x128xf32>
    tpu.vector_store %arg3[%c0_0, %c0_1], %5 {strides = array<i32>} : memref<8x128xf32, #tpu.memory_space<vmem>>, vector<1x128xf32>,
    %c1_i32 = arith.constant 1 : i32
    %7 = arith.addi %0, %c1_i32 : i32
    %8 = arith.index_cast %7 : i32 to index
    %9 = memref.load %arg1[%8] : memref<8xi32, #tpu.memory_space<smem>>
    %10 = arith.index_cast %9 : i32 to index
    %c0_2 = arith.constant 0 : index
    %11 = vector.load %arg2[%10, %c0_2] : memref<8x128xf32, #tpu.memory_space<vmem>>, vector<1x128xf32>
    %c1 = arith.constant 1 : index
    %c0_3 = arith.constant 0 : index
    %12 = vector.load %arg3[%c1, %c0_3] : memref<8x128xf32, #tpu.memory_space<vmem>>, vector<1x128xf32>
    tpu.vector_store %arg3[%c1, %c0_3], %11 {strides = array<i32>} : memref<8x128xf32, #tpu.memory_space<vmem>>, vector<1x128xf32>,
    %c2_i32 = arith.constant 2 : i32
    %13 = arith.addi %0, %c2_i32 : i32
    %14 = arith.index_cast %13 : i32 to index
    %15 = memref.load %arg1[%14] : memref<8xi32, #tpu.memory_space<smem>>
    %16 = arith.index_cast %15 : i32 to index
    %c0_4 = arith.constant 0 : index
    %17 = vector.load %arg2[%16, %c0_4] : memref<8x128xf32, #tpu.memory_space<vmem>>, vector<1x128xf32>
    %c2 = arith.constant 2 : index
    %c0_5 = arith.constant 0 : index
    %18 = vector.load %arg3[%c2, %c0_5] : memref<8x128xf32, #tpu.memory_space<vmem>>, vector<1x128xf32>
    tpu.vector_store %arg3[%c2, %c0_5], %17 {strides = array<i32>} : memref<8x128xf32, #tpu.memory_space<vmem>>, vector<1x128xf32>,
    %c3_i32 = arith.constant 3 : i32
    %19 = arith.addi %0, %c3_i32 : i32
    %20 = arith.index_cast %19 : i32 to index
    %21 = memref.load %arg1[%20] : memref<8xi32, #tpu.memory_space<smem>>
    %22 = arith.index_cast %21 : i32 to index
    %c0_6 = arith.constant 0 : index
    %23 = vector.load %arg2[%22, %c0_6] : memref<8x128xf32, #tpu.memory_space<vmem>>, vector<1x128xf32>
    %c3 = arith.constant 3 : index
    %c0_7 = arith.constant 0 : index
    %24 = vector.load %arg3[%c3, %c0_7] : memref<8x128xf32, #tpu.memory_space<vmem>>, vector<1x128xf32>
    tpu.vector_store %arg3[%c3, %c0_7], %23 {strides = array<i32>} : memref<8x128xf32, #tpu.memory_space<vmem>>, vector<1x128xf32>,
    %c4_i32 = arith.constant 4 : i32
    %25 = arith.addi %0, %c4_i32 : i32
    %26 = arith.index_cast %25 : i32 to index
    %27 = memref.load %arg1[%26] : memref<8xi32, #tpu.memory_space<smem>>
    %28 = arith.index_cast %27 : i32 to index
    %c0_8 = arith.constant 0 : index
    %29 = vector.load %arg2[%28, %c0_8] : memref<8x128xf32, #tpu.memory_space<vmem>>, vector<1x128xf32>
    %c4 = arith.constant 4 : index
    %c0_9 = arith.constant 0 : index
    %30 = vector.load %arg3[%c4, %c0_9] : memref<8x128xf32, #tpu.memory_space<vmem>>, vector<1x128xf32>
    tpu.vector_store %arg3[%c4, %c0_9], %29 {strides = array<i32>} : memref<8x128xf32, #tpu.memory_space<vmem>>, vector<1x128xf32>,
    %c5_i32 = arith.constant 5 : i32
    %31 = arith.addi %0, %c5_i32 : i32
    %32 = arith.index_cast %31 : i32 to index
    %33 = memref.load %arg1[%32] : memref<8xi32, #tpu.memory_space<smem>>
    %34 = arith.index_cast %33 : i32 to index
    %c0_10 = arith.constant 0 : index
    %35 = vector.load %arg2[%34, %c0_10] : memref<8x128xf32, #tpu.memory_space<vmem>>, vector<1x128xf32>
    %c5 = arith.constant 5 : index
    %c0_11 = arith.constant 0 : index
    %36 = vector.load %arg3[%c5, %c0_11] : memref<8x128xf32, #tpu.memory_space<vmem>>, vector<1x128xf32>
    tpu.vector_store %arg3[%c5, %c0_11], %35 {strides = array<i32>} : memref<8x128xf32, #tpu.memory_space<vmem>>, vector<1x128xf32>,
    %c6_i32 = arith.constant 6 : i32
    %37 = arith.addi %0, %c6_i32 : i32
    %38 = arith.index_cast %37 : i32 to index
    %39 = memref.load %arg1[%38] : memref<8xi32, #tpu.memory_space<smem>>
    %40 = arith.index_cast %39 : i32 to index
    %c0_12 = arith.constant 0 : index
    %41 = vector.load %arg2[%40, %c0_12] : memref<8x128xf32, #tpu.memory_space<vmem>>, vector<1x128xf32>
    %c6 = arith.constant 6 : index
    %c0_13 = arith.constant 0 : index
    %42 = vector.load %arg3[%c6, %c0_13] : memref<8x128xf32, #tpu.memory_space<vmem>>, vector<1x128xf32>
    tpu.vector_store %arg3[%c6, %c0_13], %41 {strides = array<i32>} : memref<8x128xf32, #tpu.memory_space<vmem>>, vector<1x128xf32>,
    %c7_i32 = arith.constant 7 : i32
    %43 = arith.addi %0, %c7_i32 : i32
    %44 = arith.index_cast %43 : i32 to index
    %45 = memref.load %arg1[%44] : memref<8xi32, #tpu.memory_space<smem>>
    %46 = arith.index_cast %45 : i32 to index
    %c0_14 = arith.constant 0 : index
    %47 = vector.load %arg2[%46, %c0_14] : memref<8x128xf32, #tpu.memory_space<vmem>>, vector<1x128xf32>
    %c7 = arith.constant 7 : index
    %c0_15 = arith.constant 0 : index
    %48 = vector.load %arg3[%c7, %c0_15] : memref<8x128xf32, #tpu.memory_space<vmem>>, vector<1x128xf32>
    tpu.vector_store %arg3[%c7, %c0_15], %47 {strides = array<i32>} : memref<8x128xf32, #tpu.memory_space<vmem>>, vector<1x128xf32>,
    return
  }
  func.func @transform_0(%arg0: i32, %arg1: memref<8xi32, #tpu.memory_space<smem>>) -> (i32, i32) {
    %c0_i32 = arith.constant 0 : i32
    %c0_i32_0 = arith.constant 0 : i32
    %c0_i32_1 = arith.constant 0 : i32
    return %c0_i32, %c0_i32_0 : i32, i32
  }
  func.func @transform_1(%arg0: i32, %arg1: memref<8xi32, #tpu.memory_space<smem>>) -> (i32, i32) {
    %c0_i32 = arith.constant 0 : i32
    %c0_i32_0 = arith.constant 0 : i32
    return %arg0, %c0_i32 : i32, i32
  }
}

</mosaic_0001>

<llo_original>
// kernel: genre_embed_lookup.1
$region0: #{genre_embed_lookup.1}
  #allocation0 [shape = 'u32[]', space=smem, size = 0x4, offset = 0x4, fixed_abs, tag = 'smem constant byte address 0x4 - core index']
  #allocation1 [shape = 'u32[144,128]{1,0:T(1,128)}', space=vmem, size = 0x12000, scoped, tag = 'internal scratch']
  #allocation2 [shape = 's32[1]{0}', space=sflag, size = 0x4, scoped, tag = 'scoped memory for genre_embed_lookup.1']
  #allocation3 [shape = 'u8[512]{0}', space=smem, size = 0x200, scoped, tag = 'prefetched SMEM operand 0']
  %s0 = inlined_call_operand.vmem [shape: s32[8], index: 0, kind: input, shape index: {}]
  %s1 = inlined_call_operand.hbm [shape: f32[8,128], index: 1, kind: input, shape index: {}]
  %s2 = inlined_call_operand.hbm [shape: f32[8,128], index: 2, kind: output, shape index: {}]
  %s3 = sld [smem:[#allocation0]]
  $region18: #{genre_embed_lookup.1} parent=0
    _
  %s5 = ssub.s32 1, %s3
  %s6 = scalar_select 0, %s5, %s3
  %s7 = sshll.u32 %s0, 4
  %s8 = int_to_ptr.vmem [resolvable:$true] %s7
  %10 = dma.vmem_to_smem %s8, 16, [#allocation3], [#allocation2]
  %11 = dma.done [#allocation2], 16
  %12 = sfence
  $region1: #{genre_embed_lookup.1} parent=0
    #allocation4 [shape = 'u8[4096]{0}', space=vmem, size = 0x1000, scoped, tag = 'input window, operand 1, single buffered']
    #allocation5 [shape = 's32[1]{0}', space=sflag, size = 0x4, scoped, tag = 'scoped memory for genre_embed_lookup.1']
    #allocation6 [shape = 's32[1]{0}', space=sflag, size = 0x4, scoped, tag = 'scoped memory for genre_embed_lookup.1']
    #allocation7 [shape = 'u8[4096]{0}', space=vmem, size = 0x1000, scoped, tag = 'output window, operand 0, single buffered']
    %13 = vsyncpa [#allocation5], 0
    %14 = vsyncpa [#allocation6], 0
    // Predicated region
    $region2: #{genre_embed_lookup.1} parent=1 // pred_check
      _
    $region3: #{genre_embed_lookup.1} parent=1 // pred_check_branch
      %16 = sbr.rel (0) target = $region5
    $region4: #{genre_embed_lookup.1} parent=1 // pred_region
      %s18 = ssub.s32 128, 128
      %19 = vsyncadd [#allocation5], %s18
      %s21 = sshll.u32 [#allocation4], 4
      %s22 = int_to_ptr.vmem [resolvable:$true] %s21
      %24 = dma.hbm_to_vmem [thread:$0]  %s1, 128, %s22, [#allocation5]
    $region5: #{genre_embed_lookup.1} parent=1 // pred_fallthru
      _
    // Predicated region
    $region6: #{genre_embed_lookup.1} parent=1 // pred_check
      _
    $region7: #{genre_embed_lookup.1} parent=1 // pred_check_branch
      %26 = sbr.rel (0) target = $region9
    $region8: #{genre_embed_lookup.1} parent=1 // pred_region
      %27 = dma.done [#allocation5], 128
    $region9: #{genre_embed_lookup.1} parent=1 // pred_fallthru
      _
    %s28 = smul.u32 0, 8
    %s29 = sld [smem:[#allocation3 + %s28]]
    %s30 = scalar_lea.vmem [#allocation4], %s29
    %v31 = vld [vmem:[%s30] sm:$0x1]
    %32 = vst [vmem:[#allocation7] sm:$0x1] %v31
    %s33 = sadd.s32 %s28, 1
    %s34 = sld [smem:[#allocation3 + %s33]]
    %s35 = scalar_lea.vmem [#allocation4], %s34
    %v36 = vld [vmem:[%s35] sm:$0x1]
    %37 = vst [vmem:[#allocation7 + $0x1] sm:$0x1] %v36
    %s38 = sadd.s32 %s28, 2
    %s39 = sld [smem:[#allocation3 + %s38]]
    %s40 = scalar_lea.vmem [#allocation4], %s39
    %v41 = vld [vmem:[%s40] sm:$0x1]
    %42 = vst [vmem:[#allocation7 + $0x2] sm:$0x1] %v41
    %s43 = sadd.s32 %s28, 3
    %s44 = sld [smem:[#allocation3 + %s43]]
    %s45 = scalar_lea.vmem [#allocation4], %s44
    %v46 = vld [vmem:[%s45] sm:$0x1]
    %47 = vst [vmem:[#allocation7 + $0x3] sm:$0x1] %v46
    %s48 = sadd.s32 %s28, 4
    %s49 = sld [smem:[#allocation3 + %s48]]
    %s50 = scalar_lea.vmem [#allocation4], %s49
    %v51 = vld [vmem:[%s50] sm:$0x1]
    %52 = vst [vmem:[#allocation7 + $0x4] sm:$0x1] %v51
    %s53 = sadd.s32 %s28, 5
    %s54 = sld [smem:[#allocation3 + %s53]]
    %s55 = scalar_lea.vmem [#allocation4], %s54
    %v56 = vld [vmem:[%s55] sm:$0x1]
    %57 = vst [vmem:[#allocation7 + $0x5] sm:$0x1] %v56
    %s58 = sadd.s32 %s28, 6
    %s59 = sld [smem:[#allocation3 + %s58]]
    %s60 = scalar_lea.vmem [#allocation4], %s59
    %v61 = vld [vmem:[%s60] sm:$0x1]
    %62 = vst [vmem:[#allocation7 + $0x6] sm:$0x1] %v61
    %s63 = sadd.s32 %s28, 7
    %s64 = sld [smem:[#allocation3 + %s63]]
    %s65 = scalar_lea.vmem [#allocation4], %s64
    %v66 = vld [vmem:[%s65] sm:$0x1]
    %67 = vst [vmem:[#allocation7 + $0x7] sm:$0x1] %v66
    // Predicated region
    $region10: #{genre_embed_lookup.1} parent=1 // pred_check
      _
    $region11: #{genre_embed_lookup.1} parent=1 // pred_check_branch
      %69 = sbr.rel (0) target = $region13
    $region12: #{genre_embed_lookup.1} parent=1 // pred_region
      %s71 = ssub.s32 128, 128
      %72 = vsyncadd [#allocation6], %s71
      %s74 = sshll.u32 [#allocation7], 4
      %s75 = int_to_ptr.vmem [resolvable:$true] %s74
      %77 = dma.vmem_to_hbm [thread:$0]  %s75, 128, %s2, [#allocation6]
    $region13: #{genre_embed_lookup.1} parent=1 // pred_fallthru
      _
    // Predicated region
    $region14: #{genre_embed_lookup.1} parent=1 // pred_check
      _
    $region15: #{genre_embed_lookup.1} parent=1 // pred_check_branch
      %79 = sbr.rel (0) target = $region17
    $region16: #{genre_embed_lookup.1} parent=1 // pred_region
      %80 = dma.done [#allocation6], 128
    $region17: #{genre_embed_lookup.1} parent=1 // pred_fallthru
      _
    %81 = vsyncpa [#allocation5], 1
    %82 = vsyncpa [#allocation6], 1

</llo_original>
